<compile_context>
chip_gen: v7x
topology: tpu7x:2x2x1
jax: 0.10.0
libtpu: 0.0.40
codegen_flags: <defaults>
</compile_context>

<pallas_src>
from functools import partial
from math import sqrt

import jax
import jax.numpy as jnp
from jax import lax
from jax.experimental import pallas as pl
from jax.experimental.pallas import tpu as pltpu


def _cdiv(a, b):
    return -(-a // b)


def _round_up(x, m):
    return _cdiv(x, m) * m


def _dimenet_mlp_kernel(*refs, split_actions):
    # refs (split_actions=True):
    #   x [TM,Din], a [TM,A], w1x [Din,H], w1a [A,H], b1 [1,H],
    #   w2 [H,H], b2 [1,H], w3 [1,H], b3 [1,1], q_out [1,TM], h_out [TM,H]
    # refs (split_actions=False): same without a / w1a and with w1x [Din+A,H].
    if split_actions:
        (x_ref, a_ref, w1x_ref, w1a_ref, b1_ref, w2_ref, b2_ref,
         w3_ref, b3_ref, q_ref, h_ref) = refs
        h1 = jnp.dot(x_ref[...], w1x_ref[...],
                     preferred_element_type=jnp.float32)
        h1 = h1 + jnp.dot(a_ref[...], w1a_ref[...],
                          preferred_element_type=jnp.float32)
    else:
        (x_ref, w1x_ref, b1_ref, w2_ref, b2_ref,
         w3_ref, b3_ref, q_ref, h_ref) = refs
        h1 = jnp.dot(x_ref[...], w1x_ref[...],
                     preferred_element_type=jnp.float32)

    compute_dtype = w2_ref.dtype          # weights pre-cast in the wrapper
    h1 = jnp.maximum(h1 + b1_ref[...], 0.0)

    h2 = jnp.dot(h1.astype(compute_dtype), w2_ref[...],
                 preferred_element_type=jnp.float32)
    h2 = jnp.maximum(h2 + b2_ref[...], 0.0)

    # Lane-dense final layer: [1,H] x [TM,H] contracted on H -> [1, TM].
    q_t = lax.dot_general(w3_ref[...], h2.astype(compute_dtype),
                          dimension_numbers=(((1,), (1,)), ((), ())),
                          preferred_element_type=jnp.float32)
    q_t = q_t + b3_ref[...]

    h_ref[...] = h2.astype(h_ref.dtype)
    q_ref[...] = q_t.astype(q_ref.dtype)


def _resident_spec(shape):
    """Grid-resident operand: constant index_map, single-buffered if supported."""
    idx = lambda i: (0, 0)
    try:
        return pl.BlockSpec(shape, idx, pipeline_mode=pl.Buffered(1))
    except (TypeError, AttributeError):
        return pl.BlockSpec(shape, idx)


def dimenet_agent_forward(inputs, actions, params, *, tm=2048,
                          compute_dtype=jnp.float32):
    """Pallas implementation of DimenetAgent.forward.

    inputs:  [N, input_shape]                 (N = n_agents * bs * t, flattened)
    actions: any shape [..., n_actions] or None
    params:  (w1, b1, w2, b2, w3, b3) in nn.Linear convention ([out, in] weights)
    tm:      row-tile cap (multiple of 128).  2048 is a good default for
             v5e/v6e (128 MiB VMEM) and still tiny on v7x (64 MiB).
    Returns {'Q': [N, 1], 'hidden_state': [N, hidden]}.
    """
    w1, b1, w2, b2, w3, b3 = params

    N, input_dim = inputs.shape
    hidden, num_inputs = w1.shape
    assert w2.shape == (hidden, hidden)
    assert w3.shape == (1, hidden)
    out_dtype = inputs.dtype

    if actions is not None:
        actions = actions.reshape(-1, actions.shape[-1])
        n_actions = actions.shape[-1]
        assert actions.shape[0] == N
        assert input_dim + n_actions == num_inputs
    else:
        n_actions = 0
        assert input_dim == num_inputs

    # ---- tiling: pick n_blocks first, then a 128-multiple tile -------------
    tm_cap = max(128, (int(tm) // 128) * 128)
    n_blocks = max(1, _cdiv(N, tm_cap))
    if N > 256:
        n_blocks = max(n_blocks, 2)       # >= 2 steps -> both v7x TCs busy
    tm_eff = _round_up(_cdiv(N, n_blocks), 128)
    n_pad = n_blocks * tm_eff
    grid = (n_blocks,)

    # ---- one-time wrapper-side layout / dtype prep --------------------------
    cdt = jnp.dtype(compute_dtype)
    x = inputs.astype(cdt)
    if n_pad != N:
        x = jnp.pad(x, ((0, n_pad - N), (0, 0)))

    w1_t = w1.T.astype(cdt)               # [num_inputs, hidden]
    if actions is not None:
        a = actions.astype(cdt)
        if n_pad != N:
            a = jnp.pad(a, ((0, n_pad - N), (0, 0)))
        w1x_t = w1_t[:input_dim]          # [input_dim, hidden]
        w1a_t = w1_t[input_dim:]          # [n_actions, hidden]
    else:
        a = None
        w1x_t = w1_t
        w1a_t = None
    w2_t = w2.T.astype(cdt)               # [hidden, hidden]
    w3_c = w3.astype(cdt)                 # [1, hidden] (kept [out,in] -> lane-dense q)
    b1_2d = b1.reshape(1, hidden).astype(jnp.float32)   # biases stay f32 (added
    b2_2d = b2.reshape(1, hidden).astype(jnp.float32)   # to f32 accumulators)
    b3_2d = b3.reshape(1, 1).astype(jnp.float32)

    # ---- cost estimate (advisory) -------------------------------------------
    c_is = cdt.itemsize
    o_is = jnp.dtype(out_dtype).itemsize
    flops = 2 * n_pad * (num_inputs * hidden + hidden * hidden + hidden)
    bytes_accessed = (N * num_inputs * c_is                       # x (+actions)
                      + (num_inputs * hidden + hidden * hidden + hidden) * c_is
                      + (2 * hidden + 1) * 4                      # biases
                      + n_pad * hidden * o_is + n_pad * o_is)     # h, q
    cost = pl.CostEstimate(flops=flops, transcendentals=0,
                           bytes_accessed=int(bytes_accessed))

    # ---- VMEM budget from lane/sublane-PADDED tile sizes --------------------
    def _tile_bytes(rows, cols, itemsize):
        return _round_up(max(rows, 1), 8) * _round_up(max(cols, 1), 128) * itemsize

    vmem_bytes = 2 * _tile_bytes(tm_eff, input_dim, c_is)         # x (dbl-buffered)
    if actions is not None:
        vmem_bytes += 2 * _tile_bytes(tm_eff, n_actions, c_is)    # actions
    vmem_bytes += 2 * _tile_bytes(tm_eff, hidden, o_is)           # h out
    vmem_bytes += 2 * _tile_bytes(1, tm_eff, o_is)                # q out (transposed)
    vmem_bytes += (_tile_bytes(num_inputs, hidden, c_is)          # w1 (split or not)
                   + _tile_bytes(hidden, hidden, c_is)            # w2
                   + _tile_bytes(1, hidden, c_is)                 # w3
                   + 3 * _tile_bytes(1, hidden, 4))               # b1, b2, b3
    vmem_limit = int(min(32 << 20, max(2 * vmem_bytes, 16 << 20)))

    # ---- specs ---------------------------------------------------------------
    in_specs = [pl.BlockSpec((tm_eff, input_dim), lambda i: (i, 0))]      # x tile
    operands = [x]
    if actions is not None:
        in_specs.append(pl.BlockSpec((tm_eff, n_actions), lambda i: (i, 0)))
        operands.append(a)
        in_specs += [_resident_spec((input_dim, hidden)),
                     _resident_spec((n_actions, hidden))]
        operands += [w1x_t, w1a_t]
    else:
        in_specs += [_resident_spec((num_inputs, hidden))]
        operands += [w1x_t]
    in_specs += [_resident_spec((1, hidden)),        # b1
                 _resident_spec((hidden, hidden)),   # w2
                 _resident_spec((1, hidden)),        # b2
                 _resident_spec((1, hidden)),        # w3
                 _resident_spec((1, 1))]             # b3
    operands += [b1_2d, w2_t, b2_2d, w3_c, b3_2d]

    out_specs = (
        pl.BlockSpec((1, tm_eff), lambda i: (0, i)),         # Q (transposed, lane-dense)
        pl.BlockSpec((tm_eff, hidden), lambda i: (i, 0)),    # hidden state
    )
    out_shape = (
        jax.ShapeDtypeStruct((1, n_pad), out_dtype),
        jax.ShapeDtypeStruct((n_pad, hidden), out_dtype),
    )

    kernel = partial(_dimenet_mlp_kernel, split_actions=actions is not None)

    q_t_pad, h_pad = pl.pallas_call(
        kernel,
        out_shape=out_shape,
        grid=grid,
        in_specs=in_specs,
        out_specs=out_specs,
        compiler_params=pltpu.CompilerParams(
            dimension_semantics=("parallel",),      # row tiles independent
            vmem_limit_bytes=vmem_limit,
        ),
        cost_estimate=cost,
    )(*operands)

    # TODO(synk): if downstream tolerates it, emit hidden_state in bf16 to halve
    # the largest HBM write (out_dtype currently follows the input dtype).
    q = q_t_pad[:, :N].T                 # [N, 1]
    return {"Q": q, "hidden_state": h_pad[:N]}


def dimenet_agent_forward_ref(inputs, actions, params):
    """Pure-JAX reference matching the PyTorch module."""
    w1, b1, w2, b2, w3, b3 = params
    if actions is not None:
        actions = actions.reshape(-1, actions.shape[-1])
        inputs = jnp.concatenate([inputs, actions], axis=-1)
    x = jnp.maximum(inputs @ w1.T + b1, 0.0)
    x = jnp.maximum(x @ w2.T + b2, 0.0)
    q = x @ w3.T + b3
    return {"Q": q, "hidden_state": x}


def init_hidden(hidden_size, dtype=jnp.float32):
    # Matches DimenetAgent.init_hidden (zeros; hidden state is not recurrent here).
    return jnp.zeros((1, hidden_size), dtype=dtype)


def _init_linear(key, out_features, in_features):
    # nn.Linear default init: U(-1/sqrt(fan_in), 1/sqrt(fan_in)) for w and b.
    kw, kb = jax.random.split(key)
    bound = 1.0 / sqrt(in_features)
    w = jax.random.uniform(kw, (out_features, in_features),
                           minval=-bound, maxval=bound, dtype=jnp.float32)
    b = jax.random.uniform(kb, (out_features,),
                           minval=-bound, maxval=bound, dtype=jnp.float32)
    return w, b


if __name__ == "__main__":
    key = jax.random.PRNGKey(0)
    k_in, k_act, k1, k2, k3, k_in2, k_act2 = jax.random.split(key, 7)

    # Small shapes consistent with the module:
    #   input_shape=16 obs features, n_actions=4, rnn_hidden_dim=32,
    #   N = n_agents * bs * t = 2 * 4 * 2 = 16 flattened rows.
    input_shape, n_actions, hidden = 16, 4, 32
    n_agents, bs, t = 2, 4, 2
    N = n_agents * bs * t

    inputs = jax.random.normal(k_in, (N, input_shape), dtype=jnp.float32)
    actions = jax.random.normal(k_act, (bs, t, n_agents, n_actions),
                                dtype=jnp.float32)

    w1, b1 = _init_linear(k1, hidden, input_shape + n_actions)
    w2, b2 = _init_linear(k2, hidden, hidden)
    w3, b3 = _init_linear(k3, 1, hidden)
    params = (w1, b1, w2, b2, w3, b3)

    out = jax.block_until_ready(dimenet_agent_forward(inputs, actions, params))
    ref = dimenet_agent_forward_ref(inputs, actions, params)

    assert out["Q"].shape == (N, 1)
    assert out["hidden_state"].shape == (N, hidden)
    assert jnp.allclose(out["Q"], ref["Q"], atol=1e-5, rtol=1e-5)
    assert jnp.allclose(out["hidden_state"], ref["hidden_state"],
                        atol=1e-5, rtol=1e-5)

    # actions=None path (inputs already concatenated, width = 20).
    out_na = jax.block_until_ready(
        dimenet_agent_forward(
            jnp.concatenate([inputs, actions.reshape(-1, n_actions)], axis=-1),
            None, params))
    assert jnp.allclose(out_na["Q"], ref["Q"], atol=1e-5, rtol=1e-5)
    assert jnp.allclose(out_na["hidden_state"], ref["hidden_state"],
                        atol=1e-5, rtol=1e-5)

    # Multi-block grid (N2=600, tm cap 256 -> 3 blocks of 256, padded rows sliced off).
    N2 = 600
    inputs2 = jax.random.normal(k_in2, (N2, input_shape), dtype=jnp.float32)
    actions2 = jax.random.normal(k_act2, (N2, n_actions), dtype=jnp.float32)
    out2 = jax.block_until_ready(
        dimenet_agent_forward(inputs2, actions2, params, tm=256))
    ref2 = dimenet_agent_forward_ref(inputs2, actions2, params)
    assert out2["Q"].shape == (N2, 1)
    assert jnp.allclose(out2["Q"], ref2["Q"], atol=1e-5, rtol=1e-5)
    assert jnp.allclose(out2["hidden_state"], ref2["hidden_state"],
                        atol=1e-5, rtol=1e-5)

    # bf16 MXU-feed path (weights/activations pre-cast in the wrapper, f32 accumulation).
    out_bf16 = jax.block_until_ready(
        dimenet_agent_forward(inputs, actions, params,
                              compute_dtype=jnp.bfloat16))
    assert jnp.allclose(out_bf16["Q"], ref["Q"], atol=1e-1, rtol=1e-1)

    print("KERNEL_OK")
</pallas_src>

<mosaic_0001>
module attributes {stable_mosaic.version = 11 : i64} {
  func.func @_dimenet_mlp_kernel(%arg0: i32, %arg1: memref<128x16xf32, #tpu.memory_space<vmem>>, %arg2: memref<128x4xf32, #tpu.memory_space<vmem>>, %arg3: memref<16x32xf32, #tpu.memory_space<vmem>>, %arg4: memref<4x32xf32, #tpu.memory_space<vmem>>, %arg5: memref<1x32xf32, #tpu.memory_space<vmem>>, %arg6: memref<32x32xf32, #tpu.memory_space<vmem>>, %arg7: memref<1x32xf32, #tpu.memory_space<vmem>>, %arg8: memref<1x32xf32, #tpu.memory_space<vmem>>, %arg9: memref<1x1xf32, #tpu.memory_space<vmem>>, %arg10: memref<1x128xf32, #tpu.memory_space<vmem>>, %arg11: memref<128x32xf32, #tpu.memory_space<vmem>>) attributes {dimension_semantics = [#tpu.dimension_semantics<parallel>], iteration_bounds = array<i64: 1>, scalar_prefetch = 0 : i64, scratch_operands = 0 : i64, tpu.core_type = #tpu.core_type<tc>, window_params = [{transform_indices = @transform_0, window_bounds = array<i64: 128, 16>}, {transform_indices = @transform_1, window_bounds = array<i64: 128, 4>}, {pipeline_mode = #tpu.pipeline_mode<synchronous>, transform_indices = @transform_2, window_bounds = array<i64: 16, 32>}, {pipeline_mode = #tpu.pipeline_mode<synchronous>, transform_indices = @transform_3, window_bounds = array<i64: 4, 32>}, {pipeline_mode = #tpu.pipeline_mode<synchronous>, transform_indices = @transform_4, window_bounds = array<i64: 1, 32>}, {pipeline_mode = #tpu.pipeline_mode<synchronous>, transform_indices = @transform_5, window_bounds = array<i64: 32, 32>}, {pipeline_mode = #tpu.pipeline_mode<synchronous>, transform_indices = @transform_6, window_bounds = array<i64: 1, 32>}, {pipeline_mode = #tpu.pipeline_mode<synchronous>, transform_indices = @transform_7, window_bounds = array<i64: 1, 32>}, {pipeline_mode = #tpu.pipeline_mode<synchronous>, transform_indices = @transform_8, window_bounds = array<i64: 1, 1>}, {transform_indices = @transform_9, window_bounds = array<i64: 1, 128>}, {transform_indices = @transform_10, window_bounds = array<i64: 128, 32>}]} {
    %c0 = arith.constant 0 : index
    %c0_0 = arith.constant 0 : index
    %0 = vector.load %arg1[%c0, %c0_0] : memref<128x16xf32, #tpu.memory_space<vmem>>, vector<128x16xf32>
    %c0_1 = arith.constant 0 : index
    %c0_2 = arith.constant 0 : index
    %1 = vector.load %arg3[%c0_1, %c0_2] : memref<16x32xf32, #tpu.memory_space<vmem>>, vector<16x32xf32>
    %cst = arith.constant dense<0.000000e+00> : vector<128x32xf32>
    %2 = tpu.matmul %0, %1, %cst {dimension_numbers = #tpu.dot_dimension_numbers<[1], [0], [0], [1], [0, 0, 1, 1], [], []>} : vector<128x16xf32>, vector<16x32xf32>, vector<128x32xf32> -> vector<128x32xf32>
    %c0_3 = arith.constant 0 : index
    %c0_4 = arith.constant 0 : index
    %3 = vector.load %arg2[%c0_3, %c0_4] : memref<128x4xf32, #tpu.memory_space<vmem>>, vector<128x4xf32>
    %c0_5 = arith.constant 0 : index
    %c0_6 = arith.constant 0 : index
    %4 = vector.load %arg4[%c0_5, %c0_6] : memref<4x32xf32, #tpu.memory_space<vmem>>, vector<4x32xf32>
    %cst_7 = arith.constant dense<0.000000e+00> : vector<128x32xf32>
    %5 = tpu.matmul %3, %4, %cst_7 {dimension_numbers = #tpu.dot_dimension_numbers<[1], [0], [0], [1], [0, 0, 1, 1], [], []>} : vector<128x4xf32>, vector<4x32xf32>, vector<128x32xf32> -> vector<128x32xf32>
    %6 = arith.addf %2, %5 : vector<128x32xf32>
    %c0_8 = arith.constant 0 : index
    %c0_9 = arith.constant 0 : index
    %7 = vector.load %arg5[%c0_8, %c0_9] : memref<1x32xf32, #tpu.memory_space<vmem>>, vector<1x32xf32>
    %8 = vector.broadcast %7 : vector<1x32xf32> to vector<128x32xf32>
    %9 = arith.addf %6, %8 : vector<128x32xf32>
    %cst_10 = arith.constant 0.000000e+00 : f32
    %10 = vector.broadcast %cst_10 : f32 to vector<128x32xf32>
    %11 = arith.maximumf %9, %10 : vector<128x32xf32>
    %c0_11 = arith.constant 0 : index
    %c0_12 = arith.constant 0 : index
    %12 = vector.load %arg6[%c0_11, %c0_12] : memref<32x32xf32, #tpu.memory_space<vmem>>, vector<32x32xf32>
    %cst_13 = arith.constant dense<0.000000e+00> : vector<128x32xf32>
    %13 = tpu.matmul %11, %12, %cst_13 {dimension_numbers = #tpu.dot_dimension_numbers<[1], [0], [0], [1], [0, 0, 1, 1], [], []>} : vector<128x32xf32>, vector<32x32xf32>, vector<128x32xf32> -> vector<128x32xf32>
    %c0_14 = arith.constant 0 : index
    %c0_15 = arith.constant 0 : index
    %14 = vector.load %arg7[%c0_14, %c0_15] : memref<1x32xf32, #tpu.memory_space<vmem>>, vector<1x32xf32>
    %15 = vector.broadcast %14 : vector<1x32xf32> to vector<128x32xf32>
    %16 = arith.addf %13, %15 : vector<128x32xf32>
    %cst_16 = arith.constant 0.000000e+00 : f32
    %17 = vector.broadcast %cst_16 : f32 to vector<128x32xf32>
    %18 = arith.maximumf %16, %17 : vector<128x32xf32>
    %c0_17 = arith.constant 0 : index
    %c0_18 = arith.constant 0 : index
    %19 = vector.load %arg8[%c0_17, %c0_18] : memref<1x32xf32, #tpu.memory_space<vmem>>, vector<1x32xf32>
    %cst_19 = arith.constant dense<0.000000e+00> : vector<1x128xf32>
    %20 = tpu.matmul %19, %18, %cst_19 {dimension_numbers = #tpu.dot_dimension_numbers<[1], [1], [0], [0], [0, 0, 1, 0], [], []>} : vector<1x32xf32>, vector<128x32xf32>, vector<1x128xf32> -> vector<1x128xf32>
    %c0_20 = arith.constant 0 : index
    %c0_21 = arith.constant 0 : index
    %21 = vector.load %arg9[%c0_20, %c0_21] : memref<1x1xf32, #tpu.memory_space<vmem>>, vector<1x1xf32>
    %22 = vector.broadcast %21 : vector<1x1xf32> to vector<1x128xf32>
    %23 = arith.addf %20, %22 : vector<1x128xf32>
    %c0_22 = arith.constant 0 : index
    %c0_23 = arith.constant 0 : index
    %24 = vector.load %arg11[%c0_22, %c0_23] : memref<128x32xf32, #tpu.memory_space<vmem>>, vector<128x32xf32>
    tpu.vector_store %arg11[%c0_22, %c0_23], %18 {strides = array<i32>} : memref<128x32xf32, #tpu.memory_space<vmem>>, vector<128x32xf32>,
    %c0_24 = arith.constant 0 : index
    %c0_25 = arith.constant 0 : index
    %25 = vector.load %arg10[%c0_24, %c0_25] : memref<1x128xf32, #tpu.memory_space<vmem>>, vector<1x128xf32>
    tpu.vector_store %arg10[%c0_24, %c0_25], %23 {strides = array<i32>} : memref<1x128xf32, #tpu.memory_space<vmem>>, vector<1x128xf32>,
    return
  }
  func.func @transform_0(%arg0: i32) -> (i32, i32) {
    %c0_i32 = arith.constant 0 : i32
    %c0_i32_0 = arith.constant 0 : i32
    return %arg0, %c0_i32 : i32, i32
  }
  func.func @transform_1(%arg0: i32) -> (i32, i32) {
    %c0_i32 = arith.constant 0 : i32
    %c0_i32_0 = arith.constant 0 : i32
    return %arg0, %c0_i32 : i32, i32
  }
  func.func @transform_2(%arg0: i32) -> (i32, i32) {
    %c0_i32 = arith.constant 0 : i32
    %c0_i32_0 = arith.constant 0 : i32
    %c0_i32_1 = arith.constant 0 : i32
    return %c0_i32, %c0_i32_0 : i32, i32
  }
  func.func @transform_3(%arg0: i32) -> (i32, i32) {
    %c0_i32 = arith.constant 0 : i32
    %c0_i32_0 = arith.constant 0 : i32
    %c0_i32_1 = arith.constant 0 : i32
    return %c0_i32, %c0_i32_0 : i32, i32
  }
  func.func @transform_4(%arg0: i32) -> (i32, i32) {
    %c0_i32 = arith.constant 0 : i32
    %c0_i32_0 = arith.constant 0 : i32
    %c0_i32_1 = arith.constant 0 : i32
    return %c0_i32, %c0_i32_0 : i32, i32
  }
  func.func @transform_5(%arg0: i32) -> (i32, i32) {
    %c0_i32 = arith.constant 0 : i32
    %c0_i32_0 = arith.constant 0 : i32
    %c0_i32_1 = arith.constant 0 : i32
    return %c0_i32, %c0_i32_0 : i32, i32
  }
  func.func @transform_6(%arg0: i32) -> (i32, i32) {
    %c0_i32 = arith.constant 0 : i32
    %c0_i32_0 = arith.constant 0 : i32
    %c0_i32_1 = arith.constant 0 : i32
    return %c0_i32, %c0_i32_0 : i32, i32
  }
  func.func @transform_7(%arg0: i32) -> (i32, i32) {
    %c0_i32 = arith.constant 0 : i32
    %c0_i32_0 = arith.constant 0 : i32
    %c0_i32_1 = arith.constant 0 : i32
    return %c0_i32, %c0_i32_0 : i32, i32
  }
  func.func @transform_8(%arg0: i32) -> (i32, i32) {
    %c0_i32 = arith.constant 0 : i32
    %c0_i32_0 = arith.constant 0 : i32
    %c0_i32_1 = arith.constant 0 : i32
    return %c0_i32, %c0_i32_0 : i32, i32
  }
  func.func @transform_9(%arg0: i32) -> (i32, i32) {
    %c0_i32 = arith.constant 0 : i32
    %c0_i32_0 = arith.constant 0 : i32
    return %c0_i32, %arg0 : i32, i32
  }
  func.func @transform_10(%arg0: i32) -> (i32, i32) {
    %c0_i32 = arith.constant 0 : i32
    %c0_i32_0 = arith.constant 0 : i32
    return %arg0, %c0_i32 : i32, i32
  }
}

</mosaic_0001>

<llo_original>
// kernel: tpu_custom_call.1
$region0: #{tpu_custom_call.1}
  #allocation0 [shape = 'u32[]', space=smem, size = 0x4, offset = 0x4, fixed_abs, tag = 'smem constant byte address 0x4 - core index']
  #allocation1 [shape = 'u32[144,128]{1,0:T(1,128)}', space=vmem, size = 0x12000, scoped, tag = 'internal scratch']
  #allocation2 [shape = 'f32[1,1]{1,0:T(1,128)S(1)}', space=vmem, size = 0x200, scoped, tag = 'scoped memory for tpu_custom_call.1']
  %s0 = inlined_call_operand.vmem [shape: f32[128,16], index: 0, kind: input, shape index: {}]
  %s1 = inlined_call_operand.vmem [shape: f32[128,4], index: 1, kind: input, shape index: {}]
  %s2 = inlined_call_operand.vmem [shape: f32[16,32], index: 2, kind: input, shape index: {}]
  %s3 = inlined_call_operand.vmem [shape: f32[4,32], index: 3, kind: input, shape index: {}]
  %s4 = inlined_call_operand.vmem [shape: f32[1,32], index: 4, kind: input, shape index: {}]
  %s5 = inlined_call_operand.vmem [shape: f32[32,32], index: 5, kind: input, shape index: {}]
  %s6 = inlined_call_operand.vmem [shape: f32[1,32], index: 6, kind: input, shape index: {}]
  %s7 = inlined_call_operand.vmem [shape: f32[1,32], index: 7, kind: input, shape index: {}]
  %s8 = inlined_call_operand.<no memory space> [shape: f32[1,1], index: 8, kind: input, shape index: {}]
  %s9 = inlined_call_operand.hbm [shape: f32[1,128], index: 9, kind: output, shape index: {0}]
  %s10 = inlined_call_operand.vmem [shape: f32[128,32], index: 10, kind: output, shape index: {1}]
  %11 = xla_tuple %s9, %s10
  %s12 = sld [smem:[#allocation0]]
  $region54: #{tpu_custom_call.1} parent=0
    _
  %s14 = ssub.s32 1, %s12
  %s15 = scalar_select 0, %s14, %s12
  %v16 = vstv %s8
  %17 = vst [vmem:[#allocation2] sm:$0x1] %v16
  $region1: #{tpu_custom_call.1} parent=0
    #allocation3 [shape = 'u8[512]{0}', space=vmem, size = 0x400, scoped, tag = 'output window, operand 0, single buffered']
    #allocation4 [shape = 's32[1]{0}', space=sflag, size = 0x4, scoped, tag = 'scoped memory for tpu_custom_call.1']
    %18 = vsyncpa [#allocation4], 0
    // Predicated region
    $region2: #{tpu_custom_call.1} parent=1 // pred_check
      _
    $region3: #{tpu_custom_call.1} parent=1 // pred_check_branch
      %20 = sbr.rel (0) target = $region5
    $region4: #{tpu_custom_call.1} parent=1 // pred_region
      _
    $region5: #{tpu_custom_call.1} parent=1 // pred_fallthru
      _
    // Predicated region
    $region6: #{tpu_custom_call.1} parent=1 // pred_check
      _
    $region7: #{tpu_custom_call.1} parent=1 // pred_check_branch
      %22 = sbr.rel (0) target = $region9
    $region8: #{tpu_custom_call.1} parent=1 // pred_region
      _
    $region9: #{tpu_custom_call.1} parent=1 // pred_fallthru
      _
    // Predicated region
    $region10: #{tpu_custom_call.1} parent=1 // pred_check
      _
    $region11: #{tpu_custom_call.1} parent=1 // pred_check_branch
      %24 = sbr.rel (0) target = $region13
    $region12: #{tpu_custom_call.1} parent=1 // pred_region
      _
    $region13: #{tpu_custom_call.1} parent=1 // pred_fallthru
      _
    // Predicated region
    $region14: #{tpu_custom_call.1} parent=1 // pred_check
      _
    $region15: #{tpu_custom_call.1} parent=1 // pred_check_branch
      %26 = sbr.rel (0) target = $region17
    $region16: #{tpu_custom_call.1} parent=1 // pred_region
      _
    $region17: #{tpu_custom_call.1} parent=1 // pred_fallthru
      _
    // Predicated region
    $region18: #{tpu_custom_call.1} parent=1 // pred_check
      _
    $region19: #{tpu_custom_call.1} parent=1 // pred_check_branch
      %28 = sbr.rel (0) target = $region21
    $region20: #{tpu_custom_call.1} parent=1 // pred_region
      _
    $region21: #{tpu_custom_call.1} parent=1 // pred_fallthru
      _
    // Predicated region
    $region22: #{tpu_custom_call.1} parent=1 // pred_check
      _
    $region23: #{tpu_custom_call.1} parent=1 // pred_check_branch
      %30 = sbr.rel (0) target = $region25
    $region24: #{tpu_custom_call.1} parent=1 // pred_region
      _
    $region25: #{tpu_custom_call.1} parent=1 // pred_fallthru
      _
    // Predicated region
    $region26: #{tpu_custom_call.1} parent=1 // pred_check
      _
    $region27: #{tpu_custom_call.1} parent=1 // pred_check_branch
      %32 = sbr.rel (0) target = $region29
    $region28: #{tpu_custom_call.1} parent=1 // pred_region
      _
    $region29: #{tpu_custom_call.1} parent=1 // pred_fallthru
      _
    // Predicated region
    $region30: #{tpu_custom_call.1} parent=1 // pred_check
      _
    $region31: #{tpu_custom_call.1} parent=1 // pred_check_branch
      %34 = sbr.rel (0) target = $region33
    $region32: #{tpu_custom_call.1} parent=1 // pred_region
      _
    $region33: #{tpu_custom_call.1} parent=1 // pred_fallthru
      _
    // Predicated region
    $region34: #{tpu_custom_call.1} parent=1 // pred_check
      _
    $region35: #{tpu_custom_call.1} parent=1 // pred_check_branch
      %36 = sbr.rel (0) target = $region37
    $region36: #{tpu_custom_call.1} parent=1 // pred_region
      _
    $region37: #{tpu_custom_call.1} parent=1 // pred_fallthru
      _
    %v37 = vld [vmem:[%s0] sm:$0xff]
    %v38 = vld [vmem:[%s0 + $0x8] sm:$0xff]
    %v39 = vld [vmem:[%s0 + $0x10] sm:$0xff]
    %v40 = vld [vmem:[%s0 + $0x18] sm:$0xff]
    %v41 = vld [vmem:[%s0 + $0x20] sm:$0xff]
    %v42 = vld [vmem:[%s0 + $0x28] sm:$0xff]
    %v43 = vld [vmem:[%s0 + $0x30] sm:$0xff]
    %v44 = vld [vmem:[%s0 + $0x38] sm:$0xff]
    %v45 = vld [vmem:[%s0 + $0x40] sm:$0xff]
    %v46 = vld [vmem:[%s0 + $0x48] sm:$0xff]
    %v47 = vld [vmem:[%s0 + $0x50] sm:$0xff]
    %v48 = vld [vmem:[%s0 + $0x58] sm:$0xff]
    %v49 = vld [vmem:[%s0 + $0x60] sm:$0xff]
    %v50 = vld [vmem:[%s0 + $0x68] sm:$0xff]
    %v51 = vld [vmem:[%s0 + $0x70] sm:$0xff]
    %v52 = vld [vmem:[%s0 + $0x78] sm:$0xff]
    %v53 = vld [vmem:[%s2] sm:$0xff]
    %v54 = vld [vmem:[%s2 + $0x8] sm:$0xff]
    %v55 = vld [vmem:[%s1] sm:$0xff]
    %v56 = vld [vmem:[%s1 + $0x8] sm:$0xff]
    %v57 = vld [vmem:[%s1 + $0x10] sm:$0xff]
    %v58 = vld [vmem:[%s1 + $0x18] sm:$0xff]
    %v59 = vld [vmem:[%s1 + $0x20] sm:$0xff]
    %v60 = vld [vmem:[%s1 + $0x28] sm:$0xff]
    %v61 = vld [vmem:[%s1 + $0x30] sm:$0xff]
    %v62 = vld [vmem:[%s1 + $0x38] sm:$0xff]
    %v63 = vld [vmem:[%s1 + $0x40] sm:$0xff]
    %v64 = vld [vmem:[%s1 + $0x48] sm:$0xff]
    %v65 = vld [vmem:[%s1 + $0x50] sm:$0xff]
    %v66 = vld [vmem:[%s1 + $0x58] sm:$0xff]
    %v67 = vld [vmem:[%s1 + $0x60] sm:$0xff]
    %v68 = vld [vmem:[%s1 + $0x68] sm:$0xff]
    %v69 = vld [vmem:[%s1 + $0x70] sm:$0xff]
    %v70 = vld [vmem:[%s1 + $0x78] sm:$0xff]
    %v71 = vld [vmem:[%s3] sm:$0xf]
    %vm72 = vcmask 31744
    %v74 = vsel %vm72, %v55, 0
    %v77 = vsel %vm72, %v56, 0
    %v80 = vsel %vm72, %v57, 0
    %v83 = vsel %vm72, %v58, 0
    %v86 = vsel %vm72, %v59, 0
    %v89 = vsel %vm72, %v60, 0
    %v92 = vsel %vm72, %v61, 0
    %v95 = vsel %vm72, %v62, 0
    %v98 = vsel %vm72, %v63, 0
    %v101 = vsel %vm72, %v64, 0
    %v104 = vsel %vm72, %v65, 0
    %v107 = vsel %vm72, %v66, 0
    %v110 = vsel %vm72, %v67, 0
    %v113 = vsel %vm72, %v68, 0
    %v116 = vsel %vm72, %v69, 0
    %v119 = vsel %vm72, %v70, 0
    %vm121 = vcmask 1043456
    %v123 = vsel %vm121, %v71, 0
    %125 = vmatprep.subr.mxu0 0.0
    %126 = vmatpush1.msra.mxu0 %v123
    %127 = vmatprep.subr.mxu0 0.0
    %128 = vmatpush1.msra.mxu0 0.0
    %129 = vmatprep.subr.mxu0 0.0
    %130 = vmatpush1.msra.mxu0 0.0
    %131 = vmatprep.subr.mxu0 0.0
    %132 = vmatpush1.msra.mxu0 0.0
    %133 = vmatprep.subr.mxu0 0.0
    %134 = vmatpush1.msra.mxu0 0.0
    %135 = vmatprep.subr.mxu0 0.0
    %136 = vmatpush1.msra.mxu0 0.0
    %137 = vmatprep.subr.mxu0 0.0
    %138 = vmatpush1.msra.mxu0 0.0
    %139 = vmatprep.subr.mxu0 0.0
    %140 = vmatpush1.msra.mxu0 0.0
    %141 = vmatprep.subr.mxu0 0.0
    %142 = vmatpush1.msra.mxu0 0.0
    %143 = vmatprep.subr.mxu0 0.0
    %144 = vmatpush1.msra.mxu0 0.0
    %145 = vmatprep.subr.mxu0 0.0
    %146 = vmatpush1.msra.mxu0 0.0
    %147 = vmatprep.subr.mxu0 0.0
    %148 = vmatpush1.msra.mxu0 0.0
    %149 = vmatprep.subr.mxu0 0.0
    %150 = vmatpush1.msra.mxu0 0.0
    %151 = vmatprep.subr.mxu0 0.0
    %152 = vmatpush1.msra.mxu0 0.0
    %153 = vmatprep.subr.mxu0 0.0
    %154 = vmatpush1.msra.mxu0 0.0
    %155 = vmatprep.subr.mxu0 0.0
    %156 = vmatpush1.msra.mxu0 0.0
    %157 = vmatprep.subr.mxu0 0.0
    %158 = vmatpush1.msra.mxu0 0.0
    %159 = vmatprep.subr.mxu0 0.0
    %160 = vmatpush1.msra.mxu0 0.0
    %161 = vmatprep.subr.mxu0 0.0
    %162 = vmatpush1.msra.mxu0 0.0
    %163 = vmatprep.subr.mxu0 0.0
    %164 = vmatpush1.msra.mxu0 0.0
    %165 = vmatprep.subr.mxu0 0.0
    %166 = vmatpush1.msra.mxu0 0.0
    %167 = vmatprep.subr.mxu0 0.0
    %168 = vmatpush1.msra.mxu0 0.0
    %169 = vmatprep.subr.mxu0 0.0
    %170 = vmatpush1.msra.mxu0 0.0
    %171 = vmatprep.subr.mxu0 0.0
    %172 = vmatpush1.msra.mxu0 0.0
    %173 = vmatprep.subr.mxu0 0.0
    %174 = vmatpush1.msra.mxu0 0.0
    %175 = vmatprep.subr.mxu0 0.0
    %176 = vmatpush1.msra.mxu0 0.0
    %177 = vmatprep.subr.mxu0 0.0
    %178 = vmatpush1.msra.mxu0 0.0
    %179 = vmatprep.subr.mxu0 0.0
    %180 = vmatpush1.msra.mxu0 0.0
    %181 = vmatprep.subr.mxu0 0.0
    %182 = vmatpush1.msra.mxu0 0.0
    %183 = vmatprep.subr.mxu0 0.0
    %184 = vmatpush1.msra.mxu0 0.0
    %185 = vmatprep.subr.mxu0 0.0
    %186 = vmatpush1.msra.mxu0 0.0
    %187 = vmatprep.subr.mxu0 0.0
    %188 = vmatpush1.msra.mxu0 0.0
    %189 = vmatprep.mubr.f32.mxu0 0.0
    %190 = vmatmul.mubr.f32.gmra.mrb[0].mxu0 %v74
    %v191 = vpop.f32.mrb[0].mxu0
    %v192 = vadd.f32 0.0, %v191
    %v193 = vpop.f32.mrb[0].mxu0
    %194 = vmatprep.mubr.f32.mxu0 0.0
    %195 = vmatmul.mubr.f32.gmra.mrb[0].mxu0 %v77
    %v196 = vpop.f32.mrb[0].mxu0
    %v197 = vadd.f32 0.0, %v196
    %v198 = vpop.f32.mrb[0].mxu0
    %199 = vmatprep.mubr.f32.mxu0 0.0
    %200 = vmatmul.mubr.f32.gmra.mrb[0].mxu0 %v80
    %v201 = vpop.f32.mrb[0].mxu0
    %v202 = vadd.f32 0.0, %v201
    %v203 = vpop.f32.mrb[0].mxu0
    %204 = vmatprep.mubr.f32.mxu0 0.0
    %205 = vmatmul.mubr.f32.gmra.mrb[0].mxu0 %v83
    %v206 = vpop.f32.mrb[0].mxu0
    %v207 = vadd.f32 0.0, %v206
    %v208 = vpop.f32.mrb[0].mxu0
    %209 = vmatprep.mubr.f32.mxu0 0.0
    %210 = vmatmul.mubr.f32.gmra.mrb[0].mxu0 %v86
    %v211 = vpop.f32.mrb[0].mxu0
    %v212 = vadd.f32 0.0, %v211
    %v213 = vpop.f32.mrb[0].mxu0
    %214 = vmatprep.mubr.f32.mxu0 0.0
    %215 = vmatmul.mubr.f32.gmra.mrb[0].mxu0 %v89
    %v216 = vpop.f32.mrb[0].mxu0
    %v217 = vadd.f32 0.0, %v216
    %v218 = vpop.f32.mrb[0].mxu0
    %219 = vmatprep.mubr.f32.mxu0 0.0
    %220 = vmatmul.mubr.f32.gmra.mrb[0].mxu0 %v92
    %v221 = vpop.f32.mrb[0].mxu0
    %v222 = vadd.f32 0.0, %v221
    %v223 = vpop.f32.mrb[0].mxu0
    %224 = vmatprep.mubr.f32.mxu0 0.0
    %225 = vmatmul.mubr.f32.gmra.mrb[0].mxu0 %v95
    %v226 = vpop.f32.mrb[0].mxu0
    %v227 = vadd.f32 0.0, %v226
    %v228 = vpop.f32.mrb[0].mxu0
    %229 = vmatprep.mubr.f32.mxu0 0.0
    %230 = vmatmul.mubr.f32.gmra.mrb[0].mxu0 %v98
    %v231 = vpop.f32.mrb[0].mxu0
    %v232 = vadd.f32 0.0, %v231
    %v233 = vpop.f32.mrb[0].mxu0
    %234 = vmatprep.mubr.f32.mxu0 0.0
    %235 = vmatmul.mubr.f32.gmra.mrb[0].mxu0 %v101
    %v236 = vpop.f32.mrb[0].mxu0
    %v237 = vadd.f32 0.0, %v236
    %v238 = vpop.f32.mrb[0].mxu0
    %239 = vmatprep.mubr.f32.mxu0 0.0
    %240 = vmatmul.mubr.f32.gmra.mrb[0].mxu0 %v104
    %v241 = vpop.f32.mrb[0].mxu0
    %v242 = vadd.f32 0.0, %v241
    %v243 = vpop.f32.mrb[0].mxu0
    %244 = vmatprep.mubr.f32.mxu0 0.0
    %245 = vmatmul.mubr.f32.gmra.mrb[0].mxu0 %v107
    %v246 = vpop.f32.mrb[0].mxu0
    %v247 = vadd.f32 0.0, %v246
    %v248 = vpop.f32.mrb[0].mxu0
    %249 = vmatprep.mubr.f32.mxu0 0.0
    %250 = vmatmul.mubr.f32.gmra.mrb[0].mxu0 %v110
    %v251 = vpop.f32.mrb[0].mxu0
    %v252 = vadd.f32 0.0, %v251
    %v253 = vpop.f32.mrb[0].mxu0
    %254 = vmatprep.mubr.f32.mxu0 0.0
    %255 = vmatmul.mubr.f32.gmra.mrb[0].mxu0 %v113
    %v256 = vpop.f32.mrb[0].mxu0
    %v257 = vadd.f32 0.0, %v256
    %v258 = vpop.f32.mrb[0].mxu0
    %259 = vmatprep.mubr.f32.mxu0 0.0
    %260 = vmatmul.mubr.f32.gmra.mrb[0].mxu0 %v116
    %v261 = vpop.f32.mrb[0].mxu0
    %v262 = vadd.f32 0.0, %v261
    %v263 = vpop.f32.mrb[0].mxu0
    %264 = vmatprep.mubr.f32.mxu0 0.0
    %265 = vmatmul.mubr.f32.gmra.mrb[0].mxu0 %v119
    %v266 = vpop.f32.mrb[0].mxu0
    %v267 = vadd.f32 0.0, %v266
    %v268 = vpop.f32.mrb[0].mxu0
    %269 = vdwg.mxu0
    %vm270 = vcmask 130048
    %v272 = vsel %vm270, %v37, 0
    %v275 = vsel %vm270, %v38, 0
    %v278 = vsel %vm270, %v39, 0
    %v281 = vsel %vm270, %v40, 0
    %v284 = vsel %vm270, %v41, 0
    %v287 = vsel %vm270, %v42, 0
    %v290 = vsel %vm270, %v43, 0
    %v293 = vsel %vm270, %v44, 0
    %v296 = vsel %vm270, %v45, 0
    %v299 = vsel %vm270, %v46, 0
    %v302 = vsel %vm270, %v47, 0
    %v305 = vsel %vm270, %v48, 0
    %v308 = vsel %vm270, %v49, 0
    %v311 = vsel %vm270, %v50, 0
    %v314 = vsel %vm270, %v51, 0
    %v317 = vsel %vm270, %v52, 0
    %319 = vmatprep.subr.mxu0 0.0
    %320 = vmatpush1.msra.mxu0 %v53
    %321 = vmatprep.subr.mxu0 0.0
    %322 = vmatpush1.msra.mxu0 %v54
    %323 = vmatprep.subr.mxu0 0.0
    %324 = vmatpush1.msra.mxu0 0.0
    %325 = vmatprep.subr.mxu0 0.0
    %326 = vmatpush1.msra.mxu0 0.0
    %327 = vmatprep.subr.mxu0 0.0
    %328 = vmatpush1.msra.mxu0 0.0
    %329 = vmatprep.subr.mxu0 0.0
    %330 = vmatpush1.msra.mxu0 0.0
    %331 = vmatprep.subr.mxu0 0.0
    %332 = vmatpush1.msra.mxu0 0.0
    %333 = vmatprep.subr.mxu0 0.0
    %334 = vmatpush1.msra.mxu0 0.0
    %335 = vmatprep.subr.mxu0 0.0
    %336 = vmatpush1.msra.mxu0 0.0
    %337 = vmatprep.subr.mxu0 0.0
    %338 = vmatpush1.msra.mxu0 0.0
    %339 = vmatprep.subr.mxu0 0.0
    %340 = vmatpush1.msra.mxu0 0.0
    %341 = vmatprep.subr.mxu0 0.0
    %342 = vmatpush1.msra.mxu0 0.0
    %343 = vmatprep.subr.mxu0 0.0
    %344 = vmatpush1.msra.mxu0 0.0
    %345 = vmatprep.subr.mxu0 0.0
    %346 = vmatpush1.msra.mxu0 0.0
    %347 = vmatprep.subr.mxu0 0.0
    %348 = vmatpush1.msra.mxu0 0.0
    %349 = vmatprep.subr.mxu0 0.0
    %350 = vmatpush1.msra.mxu0 0.0
    %351 = vmatprep.subr.mxu0 0.0
    %352 = vmatpush1.msra.mxu0 0.0
    %353 = vmatprep.subr.mxu0 0.0
    %354 = vmatpush1.msra.mxu0 0.0
    %355 = vmatprep.subr.mxu0 0.0
    %356 = vmatpush1.msra.mxu0 0.0
    %357 = vmatprep.subr.mxu0 0.0
    %358 = vmatpush1.msra.mxu0 0.0
    %359 = vmatprep.subr.mxu0 0.0
    %360 = vmatpush1.msra.mxu0 0.0
    %361 = vmatprep.subr.mxu0 0.0
    %362 = vmatpush1.msra.mxu0 0.0
    %363 = vmatprep.subr.mxu0 0.0
    %364 = vmatpush1.msra.mxu0 0.0
    %365 = vmatprep.subr.mxu0 0.0
    %366 = vmatpush1.msra.mxu0 0.0
    %367 = vmatprep.subr.mxu0 0.0
    %368 = vmatpush1.msra.mxu0 0.0
    %369 = vmatprep.subr.mxu0 0.0
    %370 = vmatpush1.msra.mxu0 0.0
    %371 = vmatprep.subr.mxu0 0.0
    %372 = vmatpush1.msra.mxu0 0.0
    %373 = vmatprep.subr.mxu0 0.0
    %374 = vmatpush1.msra.mxu0 0.0
    %375 = vmatprep.subr.mxu0 0.0
    %376 = vmatpush1.msra.mxu0 0.0
    %377 = vmatprep.subr.mxu0 0.0
    %378 = vmatpush1.msra.mxu0 0.0
    %379 = vmatprep.subr.mxu0 0.0
    %380 = vmatpush1.msra.mxu0 0.0
    %381 = vmatprep.subr.mxu0 0.0
    %382 = vmatpush1.msra.mxu0 0.0
    %383 = vmatprep.mubr.f32.mxu0 0.0
    %384 = vmatmul.mubr.f32.gmra.mrb[0].mxu0 %v272
    %v385 = vpop.f32.mrb[0].mxu0
    %v386 = vadd.f32 %v192, %v385
    %v387 = vpop.f32.mrb[0].mxu0
    %388 = vmatprep.mubr.f32.mxu0 0.0
    %389 = vmatmul.mubr.f32.gmra.mrb[0].mxu0 %v275
    %v390 = vpop.f32.mrb[0].mxu0
    %v391 = vadd.f32 %v197, %v390
    %v392 = vpop.f32.mrb[0].mxu0
    %393 = vmatprep.mubr.f32.mxu0 0.0
    %394 = vmatmul.mubr.f32.gmra.mrb[0].mxu0 %v278
    %v395 = vpop.f32.mrb[0].mxu0
    %v396 = vadd.f32 %v202, %v395
    %v397 = vpop.f32.mrb[0].mxu0
    %398 = vmatprep.mubr.f32.mxu0 0.0
    %399 = vmatmul.mubr.f32.gmra.mrb[0].mxu0 %v281
    %v400 = vpop.f32.mrb[0].mxu0
    %v401 = vadd.f32 %v207, %v400
    %v402 = vpop.f32.mrb[0].mxu0
    %403 = vmatprep.mubr.f32.mxu0 0.0
    %404 = vmatmul.mubr.f32.gmra.mrb[0].mxu0 %v284
    %v405 = vpop.f32.mrb[0].mxu0
    %v406 = vadd.f32 %v212, %v405
    %v407 = vpop.f32.mrb[0].mxu0
    %408 = vmatprep.mubr.f32.mxu0 0.0
    %409 = vmatmul.mubr.f32.gmra.mrb[0].mxu0 %v287
    %v410 = vpop.f32.mrb[0].mxu0
    %v411 = vadd.f32 %v217, %v410
    %v412 = vpop.f32.mrb[0].mxu0
    %413 = vmatprep.mubr.f32.mxu0 0.0
    %414 = vmatmul.mubr.f32.gmra.mrb[0].mxu0 %v290
    %v415 = vpop.f32.mrb[0].mxu0
    %v416 = vadd.f32 %v222, %v415
    %v417 = vpop.f32.mrb[0].mxu0
    %418 = vmatprep.mubr.f32.mxu0 0.0
    %419 = vmatmul.mubr.f32.gmra.mrb[0].mxu0 %v293
    %v420 = vpop.f32.mrb[0].mxu0
    %v421 = vadd.f32 %v227, %v420
    %v422 = vpop.f32.mrb[0].mxu0
    %423 = vmatprep.mubr.f32.mxu0 0.0
    %424 = vmatmul.mubr.f32.gmra.mrb[0].mxu0 %v296
    %v425 = vpop.f32.mrb[0].mxu0
    %v426 = vadd.f32 %v232, %v425
    %v427 = vpop.f32.mrb[0].mxu0
    %428 = vmatprep.mubr.f32.mxu0 0.0
    %429 = vmatmul.mubr.f32.gmra.mrb[0].mxu0 %v299
    %v430 = vpop.f32.mrb[0].mxu0
    %v431 = vadd.f32 %v237, %v430
    %v432 = vpop.f32.mrb[0].mxu0
    %433 = vmatprep.mubr.f32.mxu0 0.0
    %434 = vmatmul.mubr.f32.gmra.mrb[0].mxu0 %v302
    %v435 = vpop.f32.mrb[0].mxu0
    %v436 = vadd.f32 %v242, %v435
    %v437 = vpop.f32.mrb[0].mxu0
    %438 = vmatprep.mubr.f32.mxu0 0.0
    %439 = vmatmul.mubr.f32.gmra.mrb[0].mxu0 %v305
    %v440 = vpop.f32.mrb[0].mxu0
    %v441 = vadd.f32 %v247, %v440
    %v442 = vpop.f32.mrb[0].mxu0
    %443 = vmatprep.mubr.f32.mxu0 0.0
    %444 = vmatmul.mubr.f32.gmra.mrb[0].mxu0 %v308
    %v445 = vpop.f32.mrb[0].mxu0
    %v446 = vadd.f32 %v252, %v445
    %v447 = vpop.f32.mrb[0].mxu0
    %448 = vmatprep.mubr.f32.mxu0 0.0
    %449 = vmatmul.mubr.f32.gmra.mrb[0].mxu0 %v311
    %v450 = vpop.f32.mrb[0].mxu0
    %v451 = vadd.f32 %v257, %v450
    %v452 = vpop.f32.mrb[0].mxu0
    %453 = vmatprep.mubr.f32.mxu0 0.0
    %454 = vmatmul.mubr.f32.gmra.mrb[0].mxu0 %v314
    %v455 = vpop.f32.mrb[0].mxu0
    %v456 = vadd.f32 %v262, %v455
    %v457 = vpop.f32.mrb[0].mxu0
    %458 = vmatprep.mubr.f32.mxu0 0.0
    %459 = vmatmul.mubr.f32.gmra.mrb[0].mxu0 %v317
    %v460 = vpop.f32.mrb[0].mxu0
    %v461 = vadd.f32 %v267, %v460
    %v462 = vpop.f32.mrb[0].mxu0
    %463 = vdwg.mxu0
    %v464 = vld [vmem:[%s4] sm:$0x1]
    %v466 = vlaneseq
    %v467 = vshrl.u32 %v466, 7
    %v468 = vsub.s32 0, %v467
    %v469 = vrot.slane %v464, %v468
    %v471 = vadd.f32 %v386, %v469
    %v472 = vadd.f32 %v391, %v469
    %v473 = vadd.f32 %v396, %v469
    %v474 = vadd.f32 %v401, %v469
    %v475 = vadd.f32 %v406, %v469
    %v476 = vadd.f32 %v411, %v469
    %v477 = vadd.f32 %v416, %v469
    %v478 = vadd.f32 %v421, %v469
    %v479 = vadd.f32 %v426, %v469
    %v480 = vadd.f32 %v431, %v469
    %v481 = vadd.f32 %v436, %v469
    %v482 = vadd.f32 %v441, %v469
    %v483 = vadd.f32 %v446, %v469
    %v484 = vadd.f32 %v451, %v469
    %v485 = vadd.f32 %v456, %v469
    %v486 = vadd.f32 %v461, %v469
    %v487 = vmax.f32 %v471, 0.0
    %v488 = vmax.f32 %v472, 0.0
    %v489 = vmax.f32 %v473, 0.0
    %v490 = vmax.f32 %v474, 0.0
    %v491 = vmax.f32 %v475, 0.0
    %v492 = vmax.f32 %v476, 0.0
    %v493 = vmax.f32 %v477, 0.0
    %v494 = vmax.f32 %v478, 0.0
    %v495 = vmax.f32 %v479, 0.0
    %v496 = vmax.f32 %v480, 0.0
    %v497 = vmax.f32 %v481, 0.0
    %v498 = vmax.f32 %v482, 0.0
    %v499 = vmax.f32 %v483, 0.0
    %v500 = vmax.f32 %v484, 0.0
    %v501 = vmax.f32 %v485, 0.0
    %v502 = vmax.f32 %v486, 0.0
    %v503 = vld [vmem:[%s5] sm:$0xff]
    %v504 = vld [vmem:[%s5 + $0x8] sm:$0xff]
    %v505 = vld [vmem:[%s5 + $0x10] sm:$0xff]
    %v506 = vld [vmem:[%s5 + $0x18] sm:$0xff]
    %v507 = vld [vmem:[%s6] sm:$0x1]
    %v509 = vlaneseq
    %v510 = vshrl.u32 %v509, 7
    %v511 = vsub.s32 0, %v510
    %v512 = vrot.slane %v507, %v511
    %vm514 = vcmask 261120
    %v516 = vsel %vm514, %v487, 0
    %v519 = vsel %vm514, %v488, 0
    %v522 = vsel %vm514, %v489, 0
    %v525 = vsel %vm514, %v490, 0
    %v528 = vsel %vm514, %v491, 0
    %v531 = vsel %vm514, %v492, 0
    %v534 = vsel %vm514, %v493, 0
    %v537 = vsel %vm514, %v494, 0
    %v540 = vsel %vm514, %v495, 0
    %v543 = vsel %vm514, %v496, 0
    %v546 = vsel %vm514, %v497, 0
    %v549 = vsel %vm514, %v498, 0
    %v552 = vsel %vm514, %v499, 0
    %v555 = vsel %vm514, %v500, 0
    %v558 = vsel %vm514, %v501, 0
    %v561 = vsel %vm514, %v502, 0
    %563 = vmatprep.subr.mxu0 0.0
    %564 = vmatpush1.msra.mxu0 %v503
    %565 = vmatprep.subr.mxu0 0.0
    %566 = vmatpush1.msra.mxu0 %v504
    %567 = vmatprep.subr.mxu0 0.0
    %568 = vmatpush1.msra.mxu0 %v505
    %569 = vmatprep.subr.mxu0 0.0
    %570 = vmatpush1.msra.mxu0 %v506
    %571 = vmatprep.subr.mxu0 0.0
    %572 = vmatpush1.msra.mxu0 0.0
    %573 = vmatprep.subr.mxu0 0.0
    %574 = vmatpush1.msra.mxu0 0.0
    %575 = vmatprep.subr.mxu0 0.0
    %576 = vmatpush1.msra.mxu0 0.0
    %577 = vmatprep.subr.mxu0 0.0
    %578 = vmatpush1.msra.mxu0 0.0
    %579 = vmatprep.subr.mxu0 0.0
    %580 = vmatpush1.msra.mxu0 0.0
    %581 = vmatprep.subr.mxu0 0.0
    %582 = vmatpush1.msra.mxu0 0.0
    %583 = vmatprep.subr.mxu0 0.0
    %584 = vmatpush1.msra.mxu0 0.0
    %585 = vmatprep.subr.mxu0 0.0
    %586 = vmatpush1.msra.mxu0 0.0
    %587 = vmatprep.subr.mxu0 0.0
    %588 = vmatpush1.msra.mxu0 0.0
    %589 = vmatprep.subr.mxu0 0.0
    %590 = vmatpush1.msra.mxu0 0.0
    %591 = vmatprep.subr.mxu0 0.0
    %592 = vmatpush1.msra.mxu0 0.0
    %593 = vmatprep.subr.mxu0 0.0
    %594 = vmatpush1.msra.mxu0 0.0
    %595 = vmatprep.subr.mxu0 0.0
    %596 = vmatpush1.msra.mxu0 0.0
    %597 = vmatprep.subr.mxu0 0.0
    %598 = vmatpush1.msra.mxu0 0.0
    %599 = vmatprep.subr.mxu0 0.0
    %600 = vmatpush1.msra.mxu0 0.0
    %601 = vmatprep.subr.mxu0 0.0
    %602 = vmatpush1.msra.mxu0 0.0
    %603 = vmatprep.subr.mxu0 0.0
    %604 = vmatpush1.msra.mxu0 0.0
    %605 = vmatprep.subr.mxu0 0.0
    %606 = vmatpush1.msra.mxu0 0.0
    %607 = vmatprep.subr.mxu0 0.0
    %608 = vmatpush1.msra.mxu0 0.0
    %609 = vmatprep.subr.mxu0 0.0
    %610 = vmatpush1.msra.mxu0 0.0
    %611 = vmatprep.subr.mxu0 0.0
    %612 = vmatpush1.msra.mxu0 0.0
    %613 = vmatprep.subr.mxu0 0.0
    %614 = vmatpush1.msra.mxu0 0.0
    %615 = vmatprep.subr.mxu0 0.0
    %616 = vmatpush1.msra.mxu0 0.0
    %617 = vmatprep.subr.mxu0 0.0
    %618 = vmatpush1.msra.mxu0 0.0
    %619 = vmatprep.subr.mxu0 0.0
    %620 = vmatpush1.msra.mxu0 0.0
    %621 = vmatprep.subr.mxu0 0.0
    %622 = vmatpush1.msra.mxu0 0.0
    %623 = vmatprep.subr.mxu0 0.0
    %624 = vmatpush1.msra.mxu0 0.0
    %625 = vmatprep.subr.mxu0 0.0
    %626 = vmatpush1.msra.mxu0 0.0
    %627 = vmatprep.mubr.f32.mxu0 0.0
    %628 = vmatmul.mubr.f32.gmra.mrb[0].mxu0 %v516
    %v629 = vpop.f32.mrb[0].mxu0
    %v630 = vadd.f32 %v512, %v629
    %v631 = vpop.f32.mrb[0].mxu0
    %632 = vmatprep.mubr.f32.mxu0 0.0
    %633 = vmatmul.mubr.f32.gmra.mrb[0].mxu0 %v519
    %v634 = vpop.f32.mrb[0].mxu0
    %v635 = vadd.f32 %v512, %v634
    %v636 = vpop.f32.mrb[0].mxu0
    %637 = vmatprep.mubr.f32.mxu0 0.0
    %638 = vmatmul.mubr.f32.gmra.mrb[0].mxu0 %v522
    %v639 = vpop.f32.mrb[0].mxu0
    %v640 = vadd.f32 %v512, %v639
    %v641 = vpop.f32.mrb[0].mxu0
    %642 = vmatprep.mubr.f32.mxu0 0.0
    %643 = vmatmul.mubr.f32.gmra.mrb[0].mxu0 %v525
    %v644 = vpop.f32.mrb[0].mxu0
    %v645 = vadd.f32 %v512, %v644
    %v646 = vpop.f32.mrb[0].mxu0
    %647 = vmatprep.mubr.f32.mxu0 0.0
    %648 = vmatmul.mubr.f32.gmra.mrb[0].mxu0 %v528
    %v649 = vpop.f32.mrb[0].mxu0
    %v650 = vadd.f32 %v512, %v649
    %v651 = vpop.f32.mrb[0].mxu0
    %652 = vmatprep.mubr.f32.mxu0 0.0
    %653 = vmatmul.mubr.f32.gmra.mrb[0].mxu0 %v531
    %v654 = vpop.f32.mrb[0].mxu0
    %v655 = vadd.f32 %v512, %v654
    %v656 = vpop.f32.mrb[0].mxu0
    %657 = vmatprep.mubr.f32.mxu0 0.0
    %658 = vmatmul.mubr.f32.gmra.mrb[0].mxu0 %v534
    %v659 = vpop.f32.mrb[0].mxu0
    %v660 = vadd.f32 %v512, %v659
    %v661 = vpop.f32.mrb[0].mxu0
    %662 = vmatprep.mubr.f32.mxu0 0.0
    %663 = vmatmul.mubr.f32.gmra.mrb[0].mxu0 %v537
    %v664 = vpop.f32.mrb[0].mxu0
    %v665 = vadd.f32 %v512, %v664
    %v666 = vpop.f32.mrb[0].mxu0
    %667 = vmatprep.mubr.f32.mxu0 0.0
    %668 = vmatmul.mubr.f32.gmra.mrb[0].mxu0 %v540
    %v669 = vpop.f32.mrb[0].mxu0
    %v670 = vadd.f32 %v512, %v669
    %v671 = vpop.f32.mrb[0].mxu0
    %672 = vmatprep.mubr.f32.mxu0 0.0
    %673 = vmatmul.mubr.f32.gmra.mrb[0].mxu0 %v543
    %v674 = vpop.f32.mrb[0].mxu0
    %v675 = vadd.f32 %v512, %v674
    %v676 = vpop.f32.mrb[0].mxu0
    %677 = vmatprep.mubr.f32.mxu0 0.0
    %678 = vmatmul.mubr.f32.gmra.mrb[0].mxu0 %v546
    %v679 = vpop.f32.mrb[0].mxu0
    %v680 = vadd.f32 %v512, %v679
    %v681 = vpop.f32.mrb[0].mxu0
    %682 = vmatprep.mubr.f32.mxu0 0.0
    %683 = vmatmul.mubr.f32.gmra.mrb[0].mxu0 %v549
    %v684 = vpop.f32.mrb[0].mxu0
    %v685 = vadd.f32 %v512, %v684
    %v686 = vpop.f32.mrb[0].mxu0
    %687 = vmatprep.mubr.f32.mxu0 0.0
    %688 = vmatmul.mubr.f32.gmra.mrb[0].mxu0 %v552
    %v689 = vpop.f32.mrb[0].mxu0
    %v690 = vadd.f32 %v512, %v689
    %v691 = vpop.f32.mrb[0].mxu0
    %692 = vmatprep.mubr.f32.mxu0 0.0
    %693 = vmatmul.mubr.f32.gmra.mrb[0].mxu0 %v555
    %v694 = vpop.f32.mrb[0].mxu0
    %v695 = vadd.f32 %v512, %v694
    %v696 = vpop.f32.mrb[0].mxu0
    %697 = vmatprep.mubr.f32.mxu0 0.0
    %698 = vmatmul.mubr.f32.gmra.mrb[0].mxu0 %v558
    %v699 = vpop.f32.mrb[0].mxu0
    %v700 = vadd.f32 %v512, %v699
    %v701 = vpop.f32.mrb[0].mxu0
    %702 = vmatprep.mubr.f32.mxu0 0.0
    %703 = vmatmul.mubr.f32.gmra.mrb[0].mxu0 %v561
    %v704 = vpop.f32.mrb[0].mxu0
    %v705 = vadd.f32 %v512, %v704
    %v706 = vpop.f32.mrb[0].mxu0
    %707 = vdwg.mxu0
    %v708 = vmax.f32 %v630, 0.0
    %v709 = vmax.f32 %v635, 0.0
    %v710 = vmax.f32 %v640, 0.0
    %v711 = vmax.f32 %v645, 0.0
    %v712 = vmax.f32 %v650, 0.0
    %v713 = vmax.f32 %v655, 0.0
    %v714 = vmax.f32 %v660, 0.0
    %v715 = vmax.f32 %v665, 0.0
    %v716 = vmax.f32 %v670, 0.0
    %v717 = vmax.f32 %v675, 0.0
    %v718 = vmax.f32 %v680, 0.0
    %v719 = vmax.f32 %v685, 0.0
    %v720 = vmax.f32 %v690, 0.0
    %v721 = vmax.f32 %v695, 0.0
    %v722 = vmax.f32 %v700, 0.0
    %v723 = vmax.f32 %v705, 0.0
    %v724 = vld [vmem:[%s7] sm:$0x1]
    %v725 = vld [vmem:[#allocation2] sm:$0x1]
    %727 = vset.pattern.permute.xlu0 0
    %728 = vperm.xlu0 %727, %v725
    %v729 = vpop.permute.xlu0 %728
    %v731 = vlaneseq
    %v732 = vshrl.u32 %v731, 7
    %v733 = vsub.s32 0, %v732
    %v734 = vrot.slane %v729, %v733
    %v736 = vsel %vm514, %v724, 0
    %v739 = vsel %vm514, %v708, 0
    %v742 = vsel %vm514, %v709, 0
    %v745 = vsel %vm514, %v710, 0
    %v748 = vsel %vm514, %v711, 0
    %v751 = vsel %vm514, %v712, 0
    %v754 = vsel %vm514, %v713, 0
    %v757 = vsel %vm514, %v714, 0
    %v760 = vsel %vm514, %v715, 0
    %v763 = vsel %vm514, %v716, 0
    %v766 = vsel %vm514, %v717, 0
    %v769 = vsel %vm514, %v718, 0
    %v772 = vsel %vm514, %v719, 0
    %v775 = vsel %vm514, %v720, 0
    %v778 = vsel %vm514, %v721, 0
    %v781 = vsel %vm514, %v722, 0
    %v784 = vsel %vm514, %v723, 0
    %786 = vmatprep.subr.mxu0 0.0
    %787 = vmatpush1.xpose.msra.mxu0 %v739
    %788 = vmatprep.subr.mxu0 0.0
    %789 = vmatpush1.xpose.msra.mxu0 %v742
    %790 = vmatprep.subr.mxu0 0.0
    %791 = vmatpush1.xpose.msra.mxu0 %v745
    %792 = vmatprep.subr.mxu0 0.0
    %793 = vmatpush1.xpose.msra.mxu0 %v748
    %794 = vmatprep.subr.mxu0 0.0
    %795 = vmatpush1.xpose.msra.mxu0 %v751
    %796 = vmatprep.subr.mxu0 0.0
    %797 = vmatpush1.xpose.msra.mxu0 %v754
    %798 = vmatprep.subr.mxu0 0.0
    %799 = vmatpush1.xpose.msra.mxu0 %v757
    %800 = vmatprep.subr.mxu0 0.0
    %801 = vmatpush1.xpose.msra.mxu0 %v760
    %802 = vmatprep.subr.mxu0 0.0
    %803 = vmatpush1.xpose.msra.mxu0 %v763
    %804 = vmatprep.subr.mxu0 0.0
    %805 = vmatpush1.xpose.msra.mxu0 %v766
    %806 = vmatprep.subr.mxu0 0.0
    %807 = vmatpush1.xpose.msra.mxu0 %v769
    %808 = vmatprep.subr.mxu0 0.0
    %809 = vmatpush1.xpose.msra.mxu0 %v772
    %810 = vmatprep.subr.mxu0 0.0
    %811 = vmatpush1.xpose.msra.mxu0 %v775
    %812 = vmatprep.subr.mxu0 0.0
    %813 = vmatpush1.xpose.msra.mxu0 %v778
    %814 = vmatprep.subr.mxu0 0.0
    %815 = vmatpush1.xpose.msra.mxu0 %v781
    %816 = vmatprep.subr.mxu0 0.0
    %817 = vmatpush1.xpose.msra.mxu0 %v784
    %818 = vmatprep.subr.mxu0 0.0
    %819 = vmatpush1.xpose.msra.mxu0 0.0
    %820 = vmatprep.subr.mxu0 0.0
    %821 = vmatpush1.xpose.msra.mxu0 0.0
    %822 = vmatprep.subr.mxu0 0.0
    %823 = vmatpush1.xpose.msra.mxu0 0.0
    %824 = vmatprep.subr.mxu0 0.0
    %825 = vmatpush1.xpose.msra.mxu0 0.0
    %826 = vmatprep.subr.mxu0 0.0
    %827 = vmatpush1.xpose.msra.mxu0 0.0
    %828 = vmatprep.subr.mxu0 0.0
    %829 = vmatpush1.xpose.msra.mxu0 0.0
    %830 = vmatprep.subr.mxu0 0.0
    %831 = vmatpush1.xpose.msra.mxu0 0.0
    %832 = vmatprep.subr.mxu0 0.0
    %833 = vmatpush1.xpose.msra.mxu0 0.0
    %834 = vmatprep.subr.mxu0 0.0
    %835 = vmatpush1.xpose.msra.mxu0 0.0
    %836 = vmatprep.subr.mxu0 0.0
    %837 = vmatpush1.xpose.msra.mxu0 0.0
    %838 = vmatprep.subr.mxu0 0.0
    %839 = vmatpush1.xpose.msra.mxu0 0.0
    %840 = vmatprep.subr.mxu0 0.0
    %841 = vmatpush1.xpose.msra.mxu0 0.0
    %842 = vmatprep.subr.mxu0 0.0
    %843 = vmatpush1.xpose.msra.mxu0 0.0
    %844 = vmatprep.subr.mxu0 0.0
    %845 = vmatpush1.xpose.msra.mxu0 0.0
    %846 = vmatprep.subr.mxu0 0.0
    %847 = vmatpush1.xpose.msra.mxu0 0.0
    %848 = vmatprep.subr.mxu0 0.0
    %849 = vmatpush1.xpose.msra.mxu0 0.0
    %850 = vmatprep.mubr.f32.mxu0 0.0
    %851 = vmatmul.mubr.f32.gmra.mrb[0].mxu0 %v736
    %v852 = vpop.f32.mrb[0].mxu0
    %v853 = vadd.f32 %v734, %v852
    %v854 = vpop.f32.mrb[0].mxu0
    %855 = vdwg.mxu0
    %856 = vst.msk [vmem:[%s10] sm:$0xff] %vm514, %v708
    %857 = vst.msk [vmem:[%s10 + $0x8] sm:$0xff] %vm514, %v709
    %858 = vst.msk [vmem:[%s10 + $0x10] sm:$0xff] %vm514, %v710
    %859 = vst.msk [vmem:[%s10 + $0x18] sm:$0xff] %vm514, %v711
    %860 = vst.msk [vmem:[%s10 + $0x20] sm:$0xff] %vm514, %v712
    %861 = vst.msk [vmem:[%s10 + $0x28] sm:$0xff] %vm514, %v713
    %862 = vst.msk [vmem:[%s10 + $0x30] sm:$0xff] %vm514, %v714
    %863 = vst.msk [vmem:[%s10 + $0x38] sm:$0xff] %vm514, %v715
    %864 = vst.msk [vmem:[%s10 + $0x40] sm:$0xff] %vm514, %v716
    %865 = vst.msk [vmem:[%s10 + $0x48] sm:$0xff] %vm514, %v717
    %866 = vst.msk [vmem:[%s10 + $0x50] sm:$0xff] %vm514, %v718
    %867 = vst.msk [vmem:[%s10 + $0x58] sm:$0xff] %vm514, %v719
    %868 = vst.msk [vmem:[%s10 + $0x60] sm:$0xff] %vm514, %v720
    %869 = vst.msk [vmem:[%s10 + $0x68] sm:$0xff] %vm514, %v721
    %870 = vst.msk [vmem:[%s10 + $0x70] sm:$0xff] %vm514, %v722
    %871 = vst.msk [vmem:[%s10 + $0x78] sm:$0xff] %vm514, %v723
    %872 = vst [vmem:[#allocation3] sm:$0x1] %v853
    // Predicated region
    $region38: #{tpu_custom_call.1} parent=1 // pred_check
      _
    $region39: #{tpu_custom_call.1} parent=1 // pred_check_branch
      %874 = sbr.rel (0) target = $region41
    $region40: #{tpu_custom_call.1} parent=1 // pred_region
      %s876 = ssub.s32 16, 16
      %877 = vsyncadd [#allocation4], %s876
      %s879 = sshll.u32 [#allocation3], 4
      %s880 = int_to_ptr.vmem [resolvable:$true] %s879
      %882 = dma.vmem_to_hbm [thread:$0]  %s880, 16, %s9, [#allocation4]
    $region41: #{tpu_custom_call.1} parent=1 // pred_fallthru
      _
    // Predicated region
    $region42: #{tpu_custom_call.1} parent=1 // pred_check
      _
    $region43: #{tpu_custom_call.1} parent=1 // pred_check_branch
      %884 = sbr.rel (0) target = $region45
    $region44: #{tpu_custom_call.1} parent=1 // pred_region
      _
    $region45: #{tpu_custom_call.1} parent=1 // pred_fallthru
      _
    // Predicated region
    $region46: #{tpu_custom_call.1} parent=1 // pred_check
      _
    $region47: #{tpu_custom_call.1} parent=1 // pred_check_branch
      %886 = sbr.rel (0) target = $region49
    $region48: #{tpu_custom_call.1} parent=1 // pred_region
      %887 = dma.done [#allocation4], 16
    $region49: #{tpu_custom_call.1} parent=1 // pred_fallthru
      _
    // Predicated region
    $region50: #{tpu_custom_call.1} parent=1 // pred_check
      _
    $region51: #{tpu_custom_call.1} parent=1 // pred_check_branch
      %889 = sbr.rel (0) target = $region53
    $region52: #{tpu_custom_call.1} parent=1 // pred_region
      _
    $region53: #{tpu_custom_call.1} parent=1 // pred_fallthru
      _
    %890 = vsyncpa [#allocation4], 1

</llo_original>
